<compile_context>
chip_gen: v7x
topology: tpu7x:2x2x1
jax: 0.10.0
libtpu: 0.0.40
codegen_flags: <defaults>
</compile_context>

<pallas_src>
import math

import jax
import jax.numpy as jnp
from jax import lax
from jax.experimental import pallas as pl
from jax.experimental.pallas import tpu as pltpu


def _round_up(x, m):
    return (x + m - 1) // m * m


# Never request more than 48 MiB of scoped VMEM (v7x physical VMEM is 64 MiB
# per TensorCore; v5e/v6e have 128 MiB and tolerate this comfortably).
_VMEM_LIMIT_CLAMP = 48 << 20
# Conservative cap on the estimated resident-path working set.
_RESIDENT_VMEM_CAP = 44 << 20


def _compiler_params(semantics, vmem_needed):
    kwargs = dict(dimension_semantics=semantics)
    # v5e's scoped-VMEM default is only 16 MiB; trigger with margin at 12 MiB
    # and request 1.5x the (already conservative) estimate, clamped for v7x.
    if vmem_needed > (12 << 20):
        limit = _round_up(vmem_needed + (vmem_needed >> 1), 1 << 20)
        kwargs["vmem_limit_bytes"] = int(max(32 << 20,
                                             min(limit, _VMEM_LIMIT_CLAMP)))
    return pltpu.CompilerParams(**kwargs)


def _pe_block(row0, tb, freq_ref):
    """Positional encoding for rows [row0, row0 + tb): sin/cos by row parity.

    Uses one transcendental per element via cos(a) == sin(a + pi/2) and the
    hoisted inv_freq input (no per-element exp/divide inside the kernel)."""
    row = row0 + lax.broadcasted_iota(jnp.int32, (tb, 1), 0)          # (tb, 1)
    angle = row.astype(jnp.float32) * freq_ref[...]                   # (tb, d)
    phase = jnp.where((row % 2) == 0, jnp.float32(0.0),
                      jnp.float32(math.pi / 2.0))                     # (tb, 1)
    return jnp.sin(angle + phase)


# ---------------------------------------------------------------------------
# Path 1 ("onehot"): tiny vocab, VMEM-resident table, MXU one-hot gather.
# ---------------------------------------------------------------------------
def _onehot_kernel(ids_ref, freq_ref, tbl_ref, out_ref):
    tb, _ = out_ref.shape
    vocab_p = tbl_ref.shape[0]
    i = pl.program_id(0)
    ids = ids_ref[...]                                                # (tb, 1)
    one_hot = (ids == lax.broadcasted_iota(jnp.int32, (tb, vocab_p), 1)
               ).astype(jnp.float32)                                  # exact 0/1
    emb = jnp.dot(one_hot, tbl_ref[...],
                  preferred_element_type=jnp.float32)                 # (tb, d)
    out_ref[...] = (emb + _pe_block(i * tb, tb, freq_ref)).astype(out_ref.dtype)


def _embedding_onehot(ids_p, tbl_p, inv_freq, tb, d_pad, vmem_needed):
    t_pad = ids_p.shape[0]
    vocab_p = tbl_p.shape[0]
    nb = t_pad // tb
    ids_2d = ids_p.reshape(t_pad, 1)
    cost = pl.CostEstimate(
        flops=2 * t_pad * vocab_p * d_pad + 4 * t_pad * d_pad,
        transcendentals=t_pad * d_pad,
        bytes_accessed=t_pad * 4 + vocab_p * d_pad * 4 + t_pad * d_pad * 4)
    return pl.pallas_call(
        _onehot_kernel,
        out_shape=jax.ShapeDtypeStruct((t_pad, d_pad), jnp.float32),
        grid_spec=pltpu.PrefetchScalarGridSpec(
            num_scalar_prefetch=0,
            grid=(nb,),
            in_specs=[
                pl.BlockSpec((tb, 1), lambda i: (i, 0)),            # ids tile
                pl.BlockSpec((1, d_pad), lambda i: (0, 0)),         # inv_freq
                pl.BlockSpec((vocab_p, d_pad), lambda i: (0, 0)),   # resident table
            ],
            out_specs=pl.BlockSpec((tb, d_pad), lambda i: (i, 0)),
        ),
        compiler_params=_compiler_params(("parallel",), vmem_needed),
        cost_estimate=cost,
    )(ids_2d, inv_freq, tbl_p)


# ---------------------------------------------------------------------------
# Path 2 ("resident"): mid-size vocab, VMEM-resident table, per-row dynamic
# gather driven by scalar-prefetched ids (no one-hot temporary / MXU FLOPs).
# ---------------------------------------------------------------------------
def _resident_gather_kernel(ids_ref, freq_ref, tbl_ref, out_ref):
    tb, _ = out_ref.shape
    i = pl.program_id(0)
    base = i * tb

    def gather_row(r, carry):
        tok = ids_ref[base + r]                       # SMEM scalar read
        out_ref[pl.ds(r, 1), :] = tbl_ref[pl.ds(tok, 1), :]
        return carry
    lax.fori_loop(0, tb, gather_row, 0, unroll=8)

    out_ref[...] = out_ref[...] + _pe_block(base, tb, freq_ref).astype(out_ref.dtype)


def _embedding_resident(ids_p, tbl_p, inv_freq, tb, d_pad, vmem_needed):
    t_pad = ids_p.shape[0]
    vocab_p = tbl_p.shape[0]
    nb = t_pad // tb
    cost = pl.CostEstimate(
        flops=4 * t_pad * d_pad,
        transcendentals=t_pad * d_pad,
        bytes_accessed=t_pad * 4 + vocab_p * d_pad * 4 + 2 * t_pad * d_pad * 4)
    return pl.pallas_call(
        _resident_gather_kernel,
        out_shape=jax.ShapeDtypeStruct((t_pad, d_pad), jnp.float32),
        grid_spec=pltpu.PrefetchScalarGridSpec(
            num_scalar_prefetch=1,                    # ids -> SMEM
            grid=(nb,),
            in_specs=[
                pl.BlockSpec((1, d_pad), lambda i, ids: (0, 0)),         # inv_freq
                pl.BlockSpec((vocab_p, d_pad), lambda i, ids: (0, 0)),   # resident table
            ],
            out_specs=pl.BlockSpec((tb, d_pad), lambda i, ids: (i, 0)),
        ),
        compiler_params=_compiler_params(("parallel",), vmem_needed),
        cost_estimate=cost,
    )(ids_p, inv_freq, tbl_p)


# ---------------------------------------------------------------------------
# Path 3 ("hbm"): large vocab. Blocked manual-DMA gather (P4): table stays in
# HBM, TB row copies per grid step into a double-buffered (2, TB, d) scratch;
# block i+1 is prefetched while block i is consumed.
# ---------------------------------------------------------------------------
def _hbm_gather_kernel(ids_ref, freq_ref, tbl_hbm, out_ref, buf, sem):
    i = pl.program_id(0)
    nb = pl.num_programs(0)
    tb, _ = out_ref.shape
    slot = i % 2

    def issue_block(block, slot_):
        base = block * tb

        def issue_row(r, carry):
            tok = ids_ref[base + r]
            pltpu.make_async_copy(tbl_hbm.at[pl.ds(tok, 1)],
                                  buf.at[slot_, pl.ds(r, 1)],
                                  sem.at[slot_]).start()
            return carry
        lax.fori_loop(0, tb, issue_row, 0)

    # Prime the pipeline on the first grid step.
    @pl.when(i == 0)
    def _():
        issue_block(0, slot)

    # Prefetch the next block into the other slot while this one is in flight.
    @pl.when(i + 1 < nb)
    def _():
        issue_block(i + 1, 1 - slot)

    # Wait for the TB row copies of the current block (shared per-slot DMA
    # semaphore: each wait accounts for one row-sized transfer).
    def wait_row(r, carry):
        pltpu.make_async_copy(tbl_hbm.at[pl.ds(0, 1)],
                              buf.at[slot, pl.ds(0, 1)],
                              sem.at[slot]).wait()
        return carry
    lax.fori_loop(0, tb, wait_row, 0)

    out_ref[...] = (buf[slot] + _pe_block(i * tb, tb, freq_ref)).astype(out_ref.dtype)


def _embedding_hbm(ids_p, tbl_p, inv_freq, tb, d_pad, vmem_needed):
    t_pad = ids_p.shape[0]
    nb = t_pad // tb
    return pl.pallas_call(
        _hbm_gather_kernel,
        out_shape=jax.ShapeDtypeStruct((t_pad, d_pad), jnp.float32),
        grid_spec=pltpu.PrefetchScalarGridSpec(
            num_scalar_prefetch=1,                    # ids -> SMEM
            grid=(nb,),
            in_specs=[
                pl.BlockSpec((1, d_pad), lambda i, ids: (0, 0)),  # inv_freq
                pl.BlockSpec(memory_space=pl.ANY),                # table in HBM
            ],
            out_specs=pl.BlockSpec((tb, d_pad), lambda i, ids: (i, 0)),
            scratch_shapes=[
                pltpu.VMEM((2, tb, d_pad), jnp.float32),          # gather dbl buffer
                pltpu.SemaphoreType.DMA((2,)),                    # one sem per slot
            ],
        ),
        # Cross-grid-step prefetch state (block i+1 issued at step i) requires
        # sequential grid execution, so this axis stays "arbitrary".
        compiler_params=_compiler_params(("arbitrary",), vmem_needed),
    )(ids_p, inv_freq, tbl_p)


# ---------------------------------------------------------------------------
# Public entry point.
# ---------------------------------------------------------------------------
def embedding_layer(ids, emb_table, *, block_tokens=512, gather="auto",
                    table_vmem_budget_bytes=20 << 20,
                    onehot_vocab_threshold=512):
    """ids: (tokens,) int; emb_table: (vocab, d) float -> (tokens, d) f32."""
    ids = jnp.asarray(ids).astype(jnp.int32)
    emb_table = jnp.asarray(emb_table, dtype=jnp.float32)
    assert ids.ndim == 1 and emb_table.ndim == 2
    tokens = ids.shape[0]
    vocab, d = emb_table.shape

    # Lane-dense embedding dim: pad to a multiple of 128, slice afterwards.
    d_pad = max(_round_up(d, 128), 128)
    tbl = emb_table if d_pad == d else jnp.pad(emb_table,
                                               ((0, 0), (0, d_pad - d)))
    table_bytes = vocab * d_pad * 4

    forced = gather != "auto"
    if gather == "auto":
        if vocab <= onehot_vocab_threshold:
            gather = "onehot"
        elif table_bytes <= table_vmem_budget_bytes:
            gather = "resident"
        else:
            gather = "hbm"

    # Token block: sublane aligned, as large as the VMEM working set allows.
    tb = min(_round_up(max(block_tokens, 8), 8), _round_up(tokens, 8))

    def working_set(mode, tb_):
        est = 6 * tb_ * d_pad * 4 + (1 << 20)          # out dbl-buf + temporaries
        if mode == "onehot":
            rows_ = max(_round_up(vocab, 128), 128)
            est += 2 * rows_ * d_pad * 4               # table (maybe dbl-buffered)
            est += 3 * tb_ * rows_ * 4 + 2 * tb_ * 128 * 4
        elif mode == "resident":
            est += 2 * _round_up(vocab, 8) * d_pad * 4
        else:                                          # hbm
            est += 2 * tb_ * d_pad * 4                 # (2, tb, d) gather scratch
        return est

    while tb > 8 and working_set(gather, tb) > _RESIDENT_VMEM_CAP:
        tb = max(8, _round_up(tb // 2, 8))
    if (not forced and gather == "resident"
            and working_set(gather, tb) > _RESIDENT_VMEM_CAP):
        gather = "hbm"                                 # too big to keep resident

    # Pad the table rows for the chosen path (sublane / MXU alignment).
    if gather == "onehot":
        rows = max(_round_up(vocab, 128), 128)
    elif gather == "resident":
        rows = _round_up(vocab, 8)
    else:
        rows = vocab
    tbl_k = tbl if rows == vocab else jnp.pad(tbl, ((0, rows - vocab), (0, 0)))

    # Pad tokens to a whole number of blocks (padded rows gather id 0; sliced).
    t_pad = _round_up(tokens, tb)
    ids_p = jnp.pad(ids, (0, t_pad - tokens))

    # Hoisted inv_freq (uses the ORIGINAL d in the exponent denominator).
    y = jnp.arange(d_pad, dtype=jnp.float32)
    inv_freq = (1.0 / jnp.power(jnp.float32(10000.0),
                                (2.0 * y) / jnp.float32(d))).reshape(1, d_pad)

    needed = working_set(gather, tb)
    if gather == "onehot":
        out = _embedding_onehot(ids_p, tbl_k, inv_freq, tb, d_pad, needed)
    elif gather == "resident":
        out = _embedding_resident(ids_p, tbl_k, inv_freq, tb, d_pad, needed)
    elif gather == "hbm":
        out = _embedding_hbm(ids_p, tbl_k, inv_freq, tb, d_pad, needed)
    else:
        raise ValueError(f"unknown gather mode: {gather!r}")
    return out[:tokens, :d]


# ---------------------------------------------------------------------------
# Pure-JAX reference (matches the PyTorch module's loop semantics).
# ---------------------------------------------------------------------------
def _reference(ids, emb_table):
    tokens = ids.shape[0]
    d = emb_table.shape[1]
    pos = jnp.arange(tokens, dtype=jnp.float32)[:, None]
    y = jnp.arange(d, dtype=jnp.float32)[None, :]
    angle = pos / jnp.power(jnp.float32(10000.0), 2.0 * y / jnp.float32(d))
    pe = jnp.where((jnp.arange(tokens)[:, None] % 2) == 0,
                   jnp.sin(angle), jnp.cos(angle))
    return emb_table[ids] + pe


if __name__ == "__main__":
    key = jax.random.PRNGKey(0)
    k_emb, k_ids, k_ids2, k_emb2, k_ids3 = jax.random.split(key, 5)

    # Module-sized example: vocab=32, d=128, tokens=8 (auto -> one-hot path).
    vocab_size, embedding_dim, tokens = 32, 128, 8
    emb_table = jax.random.normal(k_emb, (vocab_size, embedding_dim),
                                  dtype=jnp.float32)
    ids = jax.random.randint(k_ids, (tokens,), 0, vocab_size, dtype=jnp.int32)

    out = jax.block_until_ready(embedding_layer(ids, emb_table))
    ref = _reference(ids, emb_table)
    assert out.shape == (tokens, embedding_dim)
    assert jnp.allclose(out, ref, atol=1e-4, rtol=1e-5), "mismatch (one-hot)"

    # Padded last block (tokens not a multiple of the token block).
    ids2 = jax.random.randint(k_ids2, (37,), 0, vocab_size, dtype=jnp.int32)
    ref2 = _reference(ids2, emb_table)
    out2 = jax.block_until_ready(
        embedding_layer(ids2, emb_table, block_tokens=16))
    assert out2.shape == (37, embedding_dim)
    assert jnp.allclose(out2, ref2, atol=1e-4, rtol=1e-5), "mismatch (blocks)"

    # Forced resident direct-gather path (mid-size vocab strategy).
    out3 = jax.block_until_ready(
        embedding_layer(ids2, emb_table, block_tokens=16, gather="resident"))
    assert jnp.allclose(out3, ref2, atol=1e-4, rtol=1e-5), "mismatch (resident)"

    # Forced HBM blocked-gather fallback (large-vocab strategy), multi-block.
    out4 = jax.block_until_ready(
        embedding_layer(ids2, emb_table, block_tokens=16, gather="hbm"))
    assert jnp.allclose(out4, ref2, atol=1e-4, rtol=1e-5), "mismatch (hbm)"

    # Non-lane-aligned embedding dim (d=96 pads to 128 inside the kernel).
    emb_table2 = jax.random.normal(k_emb2, (50, 96), dtype=jnp.float32)
    ids3 = jax.random.randint(k_ids3, (20,), 0, 50, dtype=jnp.int32)
    out5 = jax.block_until_ready(embedding_layer(ids3, emb_table2))
    assert out5.shape == (20, 96)
    assert jnp.allclose(out5, _reference(ids3, emb_table2),
                        atol=1e-4, rtol=1e-5), "mismatch (padded d)"

    print("KERNEL_OK")
</pallas_src>

<mosaic_0001>
module attributes {stable_mosaic.version = 11 : i64} {
  func.func @_onehot_kernel(%arg0: i32, %arg1: memref<8x1xi32, #tpu.memory_space<vmem>>, %arg2: memref<1x128xf32, #tpu.memory_space<vmem>>, %arg3: memref<128x128xf32, #tpu.memory_space<vmem>>, %arg4: memref<8x128xf32, #tpu.memory_space<vmem>>) attributes {dimension_semantics = [#tpu.dimension_semantics<parallel>], iteration_bounds = array<i64: 1>, scalar_prefetch = 0 : i64, scratch_operands = 0 : i64, tpu.core_type = #tpu.core_type<tc>, window_params = [{transform_indices = @transform_0, window_bounds = array<i64: 8, 1>}, {pipeline_mode = #tpu.pipeline_mode<synchronous>, transform_indices = @transform_1, window_bounds = array<i64: 1, 128>}, {pipeline_mode = #tpu.pipeline_mode<synchronous>, transform_indices = @transform_2, window_bounds = array<i64: 128, 128>}, {transform_indices = @transform_3, window_bounds = array<i64: 8, 128>}]} {
    %c0 = arith.constant 0 : index
    %c0_0 = arith.constant 0 : index
    %0 = vector.load %arg1[%c0, %c0_0] : memref<8x1xi32, #tpu.memory_space<vmem>>, vector<8x1xi32>
    %1 = tpu.iota {dimensions = array<i32: 1>} : vector<8x128xi32>
    %2 = vector.broadcast %0 : vector<8x1xi32> to vector<8x128xi32>
    %3 = arith.cmpi eq, %2, %1 : vector<8x128xi32>
    %4 = arith.extui %3 : vector<8x128xi1> to vector<8x128xi32>
    %5 = arith.sitofp %4 : vector<8x128xi32> to vector<8x128xf32>
    %c0_1 = arith.constant 0 : index
    %c0_2 = arith.constant 0 : index
    %6 = vector.load %arg3[%c0_1, %c0_2] : memref<128x128xf32, #tpu.memory_space<vmem>>, vector<128x128xf32>
    %cst = arith.constant dense<0.000000e+00> : vector<8x128xf32>
    %7 = tpu.matmul %5, %6, %cst {dimension_numbers = #tpu.dot_dimension_numbers<[1], [0], [0], [1], [0, 0, 1, 1], [], []>} : vector<8x128xf32>, vector<128x128xf32>, vector<8x128xf32> -> vector<8x128xf32>
    %c8_i32 = arith.constant 8 : i32
    %8 = arith.muli %arg0, %c8_i32 : i32
    %9 = tpu.iota {dimensions = array<i32: 0>} : vector<8x1xi32>
    %10 = vector.broadcast %8 : i32 to vector<8x1xi32>
    %11 = arith.addi %10, %9 : vector<8x1xi32>
    %12 = arith.sitofp %11 : vector<8x1xi32> to vector<8x1xf32>
    %c0_3 = arith.constant 0 : index
    %c0_4 = arith.constant 0 : index
    %13 = vector.load %arg2[%c0_3, %c0_4] : memref<1x128xf32, #tpu.memory_space<vmem>>, vector<1x128xf32>
    %14 = vector.broadcast %12 : vector<8x1xf32> to vector<8x128xf32>
    %15 = vector.broadcast %13 : vector<1x128xf32> to vector<8x128xf32>
    %16 = arith.mulf %14, %15 : vector<8x128xf32>
    %c2_i32 = arith.constant 2 : i32
    %c0_i32 = arith.constant 0 : i32
    %17 = arith.cmpi eq, %c2_i32, %c0_i32 : i32
    %c1_i32 = arith.constant 1 : i32
    %18 = arith.select %17, %c1_i32, %c2_i32 : i32
    %19 = vector.broadcast %18 : i32 to vector<8x1xi32>
    %20 = arith.remsi %11, %19 : vector<8x1xi32>
    %c0_i32_5 = arith.constant 0 : i32
    %21 = vector.broadcast %c0_i32_5 : i32 to vector<8x1xi32>
    %22 = arith.cmpi ne, %20, %21 : vector<8x1xi32>
    %c0_i32_6 = arith.constant 0 : i32
    %23 = vector.broadcast %c0_i32_6 : i32 to vector<8x1xi32>
    %24 = arith.cmpi slt, %20, %23 : vector<8x1xi32>
    %c0_i32_7 = arith.constant 0 : i32
    %25 = arith.cmpi slt, %18, %c0_i32_7 : i32
    %26 = vector.broadcast %25 : i1 to vector<8x1xi1>
    %27 = vector.broadcast %26 : vector<8x1xi1> to vector<8x1xi1>
    %28 = arith.xori %24, %27 : vector<8x1xi1>
    %29 = arith.andi %28, %22 : vector<8x1xi1>
    %30 = vector.broadcast %18 : i32 to vector<8x1xi32>
    %31 = arith.addi %20, %30 : vector<8x1xi32>
    %32 = arith.select %29, %31, %20 : vector<8x1xi1>, vector<8x1xi32>
    %c0_i32_8 = arith.constant 0 : i32
    %33 = vector.broadcast %c0_i32_8 : i32 to vector<8x1xi32>
    %34 = arith.cmpi eq, %32, %33 : vector<8x1xi32>
    %cst_9 = arith.constant 0.000000e+00 : f32
    %cst_10 = arith.constant 1.57079637 : f32
    %35 = vector.broadcast %cst_9 : f32 to vector<8x1xf32>
    %36 = vector.broadcast %cst_10 : f32 to vector<8x1xf32>
    %37 = arith.select %34, %35, %36 : vector<8x1xi1>, vector<8x1xf32>
    %38 = vector.broadcast %37 : vector<8x1xf32> to vector<8x128xf32>
    %39 = arith.addf %16, %38 : vector<8x128xf32>
    %40 = math.sin %39 : vector<8x128xf32>
    %41 = arith.addf %7, %40 : vector<8x128xf32>
    %c0_11 = arith.constant 0 : index
    %c0_12 = arith.constant 0 : index
    %42 = vector.load %arg4[%c0_11, %c0_12] : memref<8x128xf32, #tpu.memory_space<vmem>>, vector<8x128xf32>
    tpu.vector_store %arg4[%c0_11, %c0_12], %41 {strides = array<i32>} : memref<8x128xf32, #tpu.memory_space<vmem>>, vector<8x128xf32>,
    return
  }
  func.func @transform_0(%arg0: i32) -> (i32, i32) {
    %c0_i32 = arith.constant 0 : i32
    %c0_i32_0 = arith.constant 0 : i32
    return %arg0, %c0_i32 : i32, i32
  }
  func.func @transform_1(%arg0: i32) -> (i32, i32) {
    %c0_i32 = arith.constant 0 : i32
    %c0_i32_0 = arith.constant 0 : i32
    %c0_i32_1 = arith.constant 0 : i32
    return %c0_i32, %c0_i32_0 : i32, i32
  }
  func.func @transform_2(%arg0: i32) -> (i32, i32) {
    %c0_i32 = arith.constant 0 : i32
    %c0_i32_0 = arith.constant 0 : i32
    %c0_i32_1 = arith.constant 0 : i32
    return %c0_i32, %c0_i32_0 : i32, i32
  }
  func.func @transform_3(%arg0: i32) -> (i32, i32) {
    %c0_i32 = arith.constant 0 : i32
    %c0_i32_0 = arith.constant 0 : i32
    return %arg0, %c0_i32 : i32, i32
  }
}

</mosaic_0001>

<llo_original>
// kernel: tpu_custom_call.1
$region0: #{tpu_custom_call.1}
  #allocation0 [shape = 'u32[]', space=smem, size = 0x4, offset = 0x4, fixed_abs, tag = 'smem constant byte address 0x4 - core index']
  #allocation1 [shape = 'u32[144,128]{1,0:T(1,128)}', space=vmem, size = 0x12000, scoped, tag = 'internal scratch']
  %s0 = inlined_call_operand.vmem [shape: s32[8,1], index: 0, kind: input, shape index: {}]
  %s1 = inlined_call_operand.vmem [shape: f32[1,128], index: 1, kind: input, shape index: {}]
  %s2 = inlined_call_operand.hbm [shape: f32[128,128], index: 2, kind: input, shape index: {}]
  %s3 = inlined_call_operand.hbm [shape: f32[8,128], index: 3, kind: output, shape index: {}]
  %s4 = sld [smem:[#allocation0]]
  $region26: #{tpu_custom_call.1} parent=0
    _
  %s6 = ssub.s32 1, %s4
  %s7 = scalar_select 0, %s6, %s4
  $region1: #{tpu_custom_call.1} parent=0
    #allocation2 [shape = 'u8[65536]{0}', space=vmem, size = 0x10000, scoped, tag = 'input window, operand 2, single buffered']
    #allocation3 [shape = 's32[1]{0}', space=sflag, size = 0x4, scoped, tag = 'scoped memory for tpu_custom_call.1']
    #allocation4 [shape = 's32[1]{0}', space=sflag, size = 0x4, scoped, tag = 'scoped memory for tpu_custom_call.1']
    #allocation5 [shape = 'u8[4096]{0}', space=vmem, size = 0x1000, scoped, tag = 'output window, operand 0, single buffered']
    %8 = vsyncpa [#allocation3], 0
    %9 = vsyncpa [#allocation4], 0
    // Predicated region
    $region2: #{tpu_custom_call.1} parent=1 // pred_check
      _
    $region3: #{tpu_custom_call.1} parent=1 // pred_check_branch
      %11 = sbr.rel (0) target = $region5
    $region4: #{tpu_custom_call.1} parent=1 // pred_region
      _
    $region5: #{tpu_custom_call.1} parent=1 // pred_fallthru
      _
    // Predicated region
    $region6: #{tpu_custom_call.1} parent=1 // pred_check
      _
    $region7: #{tpu_custom_call.1} parent=1 // pred_check_branch
      %13 = sbr.rel (0) target = $region9
    $region8: #{tpu_custom_call.1} parent=1 // pred_region
      _
    $region9: #{tpu_custom_call.1} parent=1 // pred_fallthru
      _
    // Predicated region
    $region10: #{tpu_custom_call.1} parent=1 // pred_check
      _
    $region11: #{tpu_custom_call.1} parent=1 // pred_check_branch
      %15 = sbr.rel (0) target = $region13
    $region12: #{tpu_custom_call.1} parent=1 // pred_region
      %s17 = ssub.s32 2048, 2048
      %18 = vsyncadd [#allocation3], %s17
      %s19 = sshll.u32 [#allocation2], 4
      %s20 = int_to_ptr.vmem [resolvable:$true] %s19
      %25 = dma.hbm_to_vmem [thread:$0]  %s2, 2048, %s20, [#allocation3], 128, 128, 8
    $region13: #{tpu_custom_call.1} parent=1 // pred_fallthru
      _
    // Predicated region
    $region14: #{tpu_custom_call.1} parent=1 // pred_check
      _
    $region15: #{tpu_custom_call.1} parent=1 // pred_check_branch
      %27 = sbr.rel (0) target = $region17
    $region16: #{tpu_custom_call.1} parent=1 // pred_region
      %28 = dma.done [#allocation3], 2048
    $region17: #{tpu_custom_call.1} parent=1 // pred_fallthru
      _
    %v29 = vld [vmem:[%s0] sm:$0xff]
    %v30 = vlaneseq
    %v31 = vand.u32 %v30, 127
    %32 = vset.pattern.permute.xlu0 0
    %33 = vperm.xlu0 %32, %v29
    %v34 = vpop.permute.xlu0 %33
    %vm35 = vcmp.eq.s32.totalorder %v34, %v31
    %v36 = vsel %vm35, 1, 0
    %v37 = vcvt.s32.f32 %v36
    %v38 = vld [vmem:[#allocation2] sm:$0xff]
    %v39 = vld [vmem:[#allocation2 + $0x8] sm:$0xff]
    %v40 = vld [vmem:[#allocation2 + $0x10] sm:$0xff]
    %v41 = vld [vmem:[#allocation2 + $0x18] sm:$0xff]
    %v42 = vld [vmem:[#allocation2 + $0x20] sm:$0xff]
    %v43 = vld [vmem:[#allocation2 + $0x28] sm:$0xff]
    %v44 = vld [vmem:[#allocation2 + $0x30] sm:$0xff]
    %v45 = vld [vmem:[#allocation2 + $0x38] sm:$0xff]
    %v46 = vld [vmem:[#allocation2 + $0x40] sm:$0xff]
    %v47 = vld [vmem:[#allocation2 + $0x48] sm:$0xff]
    %v48 = vld [vmem:[#allocation2 + $0x50] sm:$0xff]
    %v49 = vld [vmem:[#allocation2 + $0x58] sm:$0xff]
    %v50 = vld [vmem:[#allocation2 + $0x60] sm:$0xff]
    %v51 = vld [vmem:[#allocation2 + $0x68] sm:$0xff]
    %v52 = vld [vmem:[#allocation2 + $0x70] sm:$0xff]
    %v53 = vld [vmem:[#allocation2 + $0x78] sm:$0xff]
    %s54 = smul.u32 0, 8
    %v55 = vlaneseq
    %v56 = vshrl.u32 %v55, 7
    %v57 = vstv %s54
    %v58 = vadd.s32 %v57, %v56
    %v59 = vcvt.s32.f32 %v58
    %v60 = vld [vmem:[%s1] sm:$0x1]
    %v62 = vlaneseq
    %v63 = vshrl.u32 %v62, 7
    %v64 = vsub.s32 0, %v63
    %v65 = vrot.slane %v60, %v64
    %v67 = vmul.f32 %v59, %v65
    %vm68 = vcmp.lt.s32.totalorder %v58, 0
    %v69 = vsub.s32 0, %v58
    %v70 = vsel %vm68, %v69, %v58
    %v71 = vshrl.u32 %v70, 1
    %v72 = vand.u32 %v70, 1
    %v73 = vsub.s32 0, %v72
    %v74 = vsel %vm68, %v73, %v72
    %vm75 = vcmp.ne.s32.totalorder %v74, 0
    %vm76 = vcmp.lt.s32.totalorder %v74, 0
    %vm77 = vmand %vm76, %vm75
    %v78 = vadd.s32 %v74, 2
    %v79 = vsel %vm77, %v78, %v74
    %vm80 = vcmp.eq.s32.totalorder %v79, 0
    %v81 = vsel %vm80, 0.0, 1.5707964
    %v82 = vadd.f32 %v67, %v81
    %v83 = vand.u32 2147483647, %v82
    %vm84 = vcmp.le.f32.partialorder %v83, 0.7853982
    %vm85 = vcmp.lt.s32.totalorder %v82, 0
    %v86 = vand.u32 %v82, 2139095040
    %v87 = vshrl.u32 %v86, 23
    %v88 = vsub.s32 %v87, 127
    %v89 = vand.u32 2147483647, %v82
    %v90 = vand.u32 %v89, 8388607
    %v91 = vor.u32 %v90, 8388608
    %v92 = vsub.s32 0, %v91
    %v93 = vadd.s32 %v88, 1
    %vm94 = vcmp.gt.s32.totalorder %v93, 0
    %v95 = vsel %vm94, %v93, 0
    %v96 = vshrl.u32 %v95, 5
    %v97 = vand.u32 %v95, 31
    %v98 = vsub.s32 32, %v97
    %v99 = vshrl.u32 683565275, %v98
    %v100 = vshll.u32 683565275, %v97
    %v101 = vshrl.u32 2475754826, %v98
    %v102 = vor.u32 %v100, %v101
    %v103 = vshll.u32 2475754826, %v97
    %v104 = vshrl.u32 2131351028, %v98
    %v105 = vor.u32 %v103, %v104
    %v106 = vshll.u32 2131351028, %v97
    %v107 = vshrl.u32 2102212464, %v98
    %v108 = vor.u32 %v106, %v107
    %v109 = vshll.u32 2102212464, %v97
    %v110 = vshrl.u32 920167782, %v98
    %v111 = vor.u32 %v109, %v110
    %v112 = vshll.u32 920167782, %v97
    %v113 = vshrl.u32 1326507024, %v98
    %v114 = vor.u32 %v112, %v113
    %vm115 = vcmp.lt.s32.totalorder %v96, 1
    %vm116 = vcmp.lt.s32.totalorder %v96, 2
    %vm117 = vcmp.lt.s32.totalorder %v96, 3
    %vm118 = vcmp.lt.s32.totalorder %v96, 4
    %v119 = vsel %vm115, %v99, %v102
    %v120 = vsel %vm118, %v108, 2102212464
    %v121 = vsel %vm117, %v105, %v120
    %v122 = vsel %vm116, %v119, %v121
    %v123 = vsel %vm115, %v102, %v105
    %v124 = vsel %vm118, %v111, 920167782
    %v125 = vsel %vm117, %v108, %v124
    %v126 = vsel %vm116, %v123, %v125
    %v127 = vsel %vm115, %v105, %v108
    %v128 = vsel %vm118, %v114, 1326507024
    %v129 = vsel %vm117, %v111, %v128
    %v130 = vsel %vm116, %v127, %v129
    %v131 = vshll.u32 %v91, 8
    %v132 = vmul.u32.u64.compose %v131, %v130
    %v133 = vextract.low.u32 %v132
    %v134 = vextract.high.u32 %v132
    %v135 = vmul.u32.u64.compose %v131, %v126
    %v136 = vextract.low.u32 %v135
    %v137 = vextract.high.u32 %v135
    %v138 = vmul.u32 %v131, %v122
    %v139 = vadd.s32 %v134, %v136
    %vm140 = vc.u32 %v134, %v136
    %v141 = vadd.s32 %v137, 1
    %v142 = vsel %vm140, %v141, %v137
    %v143 = vadd.s32 %v138, %v142
    %v144 = vadd.s32 %v143, 536870912
    %v145 = vshrl.u32 %v144, 30
    %v146 = vshll.u32 %v145, 30
    %v147 = vsub.s32 %v143, %v146
    %vm148 = vcmp.lt.s32.totalorder %v147, 0
    %v149 = vsub.s32 0, %v147
    %v150 = vsel %vm148, %v149, %v147
    %v151 = vclz %v150
    %v152 = vsub.s32 %v151, 2
    %vm153 = vcmp.gt.s32.totalorder 0, %v152
    %v154 = vsel %vm153, 0, %v152
    %v155 = vsub.s32 32, %v154
    %v156 = vshll.u32 %v147, %v154
    %v157 = vshrl.u32 %v139, %v155
    %v158 = vor.u32 %v156, %v157
    %v159 = vsub.s32 4294967266, %v154
    %v160 = vadd.s32 %v159, 127
    %v161 = vshll.u32 %v160, 23
    %v162 = vor.u32 4788187, %v161
    %v163 = vand.u32 2147483647, %v162
    %v165 = vcvt.s32.f32 %v158
    %v166 = vmul.f32 %v165, %v163
    %v167 = vxor.u32 %v166, 2147483648
    %v168 = vsel %vm85, %v167, %v166
    %v169 = vsub.s32 4, %v145
    %v170 = vsel %vm85, %v169, %v145
    %v171 = vsel %vm84, %v82, %v168
    %v172 = vsel %vm84, 0, %v170
    %v173 = vcosq.f32.pop %v171
    %v174 = vsinq.f32.pop %v171
    %vm175 = vweird.f32 %v82
    %v176 = vadd.s32 %v172, 3
    %v177 = vand.u32 %v176, 3
    %vm178 = vcmp.lt.s32.totalorder %v177, 2
    %vm179 = vcmp.eq.s32.totalorder %v177, 0
    %v180 = vxor.u32 %v174, 2147483648
    %v181 = vsel %vm179, %v173, %v180
    %vm182 = vcmp.eq.s32.totalorder %v177, 2
    %v183 = vxor.u32 %v173, 2147483648
    %v184 = vsel %vm182, %v183, %v174
    %v185 = vsel %vm178, %v181, %v184
    %v186 = vsel %vm175, nan, %v185
    %187 = vmatprep.subr.mxu0 0.0
    %188 = vmatpush1.msra.mxu0 %v38
    %189 = vmatprep.subr.mxu0 0.0
    %190 = vmatpush1.msra.mxu0 %v39
    %191 = vmatprep.subr.mxu0 0.0
    %192 = vmatpush1.msra.mxu0 %v40
    %193 = vmatprep.subr.mxu0 0.0
    %194 = vmatpush1.msra.mxu0 %v41
    %195 = vmatprep.subr.mxu0 0.0
    %196 = vmatpush1.msra.mxu0 %v42
    %197 = vmatprep.subr.mxu0 0.0
    %198 = vmatpush1.msra.mxu0 %v43
    %199 = vmatprep.subr.mxu0 0.0
    %200 = vmatpush1.msra.mxu0 %v44
    %201 = vmatprep.subr.mxu0 0.0
    %202 = vmatpush1.msra.mxu0 %v45
    %203 = vmatprep.subr.mxu0 0.0
    %204 = vmatpush1.msra.mxu0 %v46
    %205 = vmatprep.subr.mxu0 0.0
    %206 = vmatpush1.msra.mxu0 %v47
    %207 = vmatprep.subr.mxu0 0.0
    %208 = vmatpush1.msra.mxu0 %v48
    %209 = vmatprep.subr.mxu0 0.0
    %210 = vmatpush1.msra.mxu0 %v49
    %211 = vmatprep.subr.mxu0 0.0
    %212 = vmatpush1.msra.mxu0 %v50
    %213 = vmatprep.subr.mxu0 0.0
    %214 = vmatpush1.msra.mxu0 %v51
    %215 = vmatprep.subr.mxu0 0.0
    %216 = vmatpush1.msra.mxu0 %v52
    %217 = vmatprep.subr.mxu0 0.0
    %218 = vmatpush1.msra.mxu0 %v53
    %219 = vmatprep.subr.mxu0 0.0
    %220 = vmatpush1.msra.mxu0 0.0
    %221 = vmatprep.subr.mxu0 0.0
    %222 = vmatpush1.msra.mxu0 0.0
    %223 = vmatprep.subr.mxu0 0.0
    %224 = vmatpush1.msra.mxu0 0.0
    %225 = vmatprep.subr.mxu0 0.0
    %226 = vmatpush1.msra.mxu0 0.0
    %227 = vmatprep.subr.mxu0 0.0
    %228 = vmatpush1.msra.mxu0 0.0
    %229 = vmatprep.subr.mxu0 0.0
    %230 = vmatpush1.msra.mxu0 0.0
    %231 = vmatprep.subr.mxu0 0.0
    %232 = vmatpush1.msra.mxu0 0.0
    %233 = vmatprep.subr.mxu0 0.0
    %234 = vmatpush1.msra.mxu0 0.0
    %235 = vmatprep.subr.mxu0 0.0
    %236 = vmatpush1.msra.mxu0 0.0
    %237 = vmatprep.subr.mxu0 0.0
    %238 = vmatpush1.msra.mxu0 0.0
    %239 = vmatprep.subr.mxu0 0.0
    %240 = vmatpush1.msra.mxu0 0.0
    %241 = vmatprep.subr.mxu0 0.0
    %242 = vmatpush1.msra.mxu0 0.0
    %243 = vmatprep.subr.mxu0 0.0
    %244 = vmatpush1.msra.mxu0 0.0
    %245 = vmatprep.subr.mxu0 0.0
    %246 = vmatpush1.msra.mxu0 0.0
    %247 = vmatprep.subr.mxu0 0.0
    %248 = vmatpush1.msra.mxu0 0.0
    %249 = vmatprep.subr.mxu0 0.0
    %250 = vmatpush1.msra.mxu0 0.0
    %251 = vmatprep.mubr.f32.mxu0 0.0
    %252 = vmatmul.mubr.f32.gmra.mrb[0].mxu0 %v37
    %v253 = vpop.f32.mrb[0].mxu0
    %v254 = vadd.f32 %v186, %v253
    %v255 = vpop.f32.mrb[0].mxu0
    %256 = vdwg.mxu0
    %257 = vst [vmem:[#allocation5] sm:$0xff] %v254
    // Predicated region
    $region18: #{tpu_custom_call.1} parent=1 // pred_check
      _
    $region19: #{tpu_custom_call.1} parent=1 // pred_check_branch
      %259 = sbr.rel (0) target = $region21
    $region20: #{tpu_custom_call.1} parent=1 // pred_region
      %s261 = ssub.s32 128, 128
      %262 = vsyncadd [#allocation4], %s261
      %s264 = sshll.u32 [#allocation5], 4
      %s265 = int_to_ptr.vmem [resolvable:$true] %s264
      %267 = dma.vmem_to_hbm [thread:$0]  %s265, 128, %s3, [#allocation4]
    $region21: #{tpu_custom_call.1} parent=1 // pred_fallthru
      _
    // Predicated region
    $region22: #{tpu_custom_call.1} parent=1 // pred_check
      _
    $region23: #{tpu_custom_call.1} parent=1 // pred_check_branch
      %269 = sbr.rel (0) target = $region25
    $region24: #{tpu_custom_call.1} parent=1 // pred_region
      %270 = dma.done [#allocation4], 128
    $region25: #{tpu_custom_call.1} parent=1 // pred_fallthru
      _
    %271 = vsyncpa [#allocation3], 1
    %272 = vsyncpa [#allocation4], 1

</llo_original>
